<compile_context>
chip_gen: v7x
topology: tpu7x:2x2x1
jax: 0.10.0
libtpu: 0.0.40
codegen_flags: <defaults>
</compile_context>

<pallas_src>
import jax
import jax.numpy as jnp
from jax.experimental import pallas as pl
from jax.experimental.pallas import tpu as pltpu


SAMPLES_PER_ROW = 32            # 32 samples * 4 features = 128 lanes
IN_F, HID_F, OUT_F = 4, 3, 2
LANE_IN = SAMPLES_PER_ROW * IN_F        # 128 (input lanes per packed row)
LANE_HID = SAMPLES_PER_ROW * IN_F       # 128 (hidden padded 3 -> 4 slots)
LANE_OUT = SAMPLES_PER_ROW * OUT_F      # 64  (output lanes per packed row)


def mlp_kernel(x_ref, w1_ref, b1_ref, w2_ref, b2_ref, o_ref):
    """One batch tile: (TR, 128) packed samples -> (TR, 64) packed outputs.

    Each row holds 32 independent samples; the block-diagonal weights keep
    samples from mixing, so both layers are single MXU matmuls.
    """
    x = x_ref[...].astype(jnp.float32)                               # (TR, 128)
    h = jnp.dot(x, w1_ref[...], preferred_element_type=jnp.float32)  # (TR, 128)
    h = jnp.maximum(h + b1_ref[...], 0.0)
    y = jnp.dot(h, w2_ref[...], preferred_element_type=jnp.float32)  # (TR, 64)
    o_ref[...] = (y + b2_ref[...]).astype(o_ref.dtype)


def _block_diag_params(w1, b1, w2, b2):
    """Expand the tiny (4,3)/(3,2) weights into block-diagonal MXU operands."""
    f32 = jnp.float32
    eye = jnp.eye(SAMPLES_PER_ROW, dtype=f32)
    # Pad hidden 3 -> 4 slots/sample (extra slot is zero weight + zero bias,
    # ReLU keeps it zero, and the corresponding W2 row is zero).
    w1_pad = jnp.pad(w1.astype(f32), ((0, 0), (0, 1)))               # (4, 4)
    w2_pad = jnp.pad(w2.astype(f32), ((0, 1), (0, 0)))               # (4, 2)
    w1_big = jnp.einsum("st,kj->sktj", eye, w1_pad).reshape(LANE_IN, LANE_HID)
    w2_big = jnp.einsum("st,kj->sktj", eye, w2_pad).reshape(LANE_HID, LANE_OUT)
    b1_big = jnp.tile(jnp.concatenate([b1.astype(f32), jnp.zeros((1,), f32)]),
                      SAMPLES_PER_ROW).reshape(1, LANE_HID)
    b2_big = jnp.tile(b2.astype(f32), SAMPLES_PER_ROW).reshape(1, LANE_OUT)
    return w1_big, b1_big, w2_big, b2_big


def net_forward(x, w1, b1, w2, b2, *, tile_rows=8192):
    """x: (B, 4). w1: (4,3), b1: (3,), w2: (3,2), b2: (2,). Returns (B, 2)."""
    B, f_in = x.shape
    assert f_in == IN_F

    # Pack 32 samples per 128-lane row (free contiguous reshape). Only pad to
    # a multiple of 32 when strictly needed.
    b_pack = ((B + SAMPLES_PER_ROW - 1) // SAMPLES_PER_ROW) * SAMPLES_PER_ROW
    if b_pack != B:
        x = jnp.pad(x, ((0, b_pack - B), (0, 0)))
    rows = b_pack // SAMPLES_PER_ROW
    x_rs = x.reshape(rows, LANE_IN)

    # Batch tile: big enough to amortize ~0.35 us/step pipeline overhead
    # (tile traffic = tr * 768 B, double-buffered), small enough for v7x's
    # 64 MiB VMEM; split into >= 2 blocks so megacore can shard the batch.
    if rows <= 8:
        tr = rows                                   # full-dim block (legal)
    else:
        half = -(-rows // 2)
        tr = min(tile_rows, ((half + 7) // 8) * 8)  # multiple of 8
    grid = (pl.cdiv(rows, tr),)                     # ragged last block masked

    w1_big, b1_big, w2_big, b2_big = _block_diag_params(w1, b1, w2, b2)

    out = pl.pallas_call(
        mlp_kernel,
        out_shape=jax.ShapeDtypeStruct((rows, LANE_OUT), x.dtype),
        grid=grid,
        in_specs=[
            pl.BlockSpec((tr, LANE_IN), lambda i: (i, 0)),          # x tile
            pl.BlockSpec((LANE_IN, LANE_HID), lambda i: (0, 0)),    # W1 (resident)
            pl.BlockSpec((1, LANE_HID), lambda i: (0, 0)),          # b1
            pl.BlockSpec((LANE_HID, LANE_OUT), lambda i: (0, 0)),   # W2 (resident)
            pl.BlockSpec((1, LANE_OUT), lambda i: (0, 0)),          # b2
        ],
        out_specs=pl.BlockSpec((tr, LANE_OUT), lambda i: (i, 0)),
        compiler_params=pltpu.CompilerParams(
            dimension_semantics=("parallel",),      # batch axis -> megacore
            vmem_limit_bytes=32 * 1024 * 1024,
        ),
    )(x_rs, w1_big, b1_big, w2_big, b2_big)

    # (rows, 64) -> (b_pack, 2) is again a free contiguous reshape.
    return out.reshape(b_pack, OUT_F)[:B]


def init_params():
    """Deterministic init mimicking PyTorch Linear's U(-1/sqrt(fan_in), ...)."""
    key = jax.random.PRNGKey(0)
    k1, k2, k3, k4 = jax.random.split(key, 4)

    bound1 = 1.0 / jnp.sqrt(4.0)
    # Stored already transposed: (in, out) so the math is x @ w + b.
    w1 = jax.random.uniform(k1, (4, 3), jnp.float32, -bound1, bound1)
    b1 = jax.random.uniform(k2, (3,), jnp.float32, -bound1, bound1)

    bound2 = 1.0 / jnp.sqrt(3.0)
    w2 = jax.random.uniform(k3, (3, 2), jnp.float32, -bound2, bound2)
    b2 = jax.random.uniform(k4, (2,), jnp.float32, -bound2, bound2)
    return w1, b1, w2, b2


if __name__ == "__main__":
    w1, b1, w2, b2 = init_params()
    key = jax.random.PRNGKey(0)

    def ref(x):
        return jnp.maximum(x @ w1 + b1, 0.0) @ w2 + b2

    # Small batch (single packed row, grid of 1).
    x_small = jax.random.normal(jax.random.fold_in(key, 123), (8, 4), jnp.float32)
    out_small = jax.block_until_ready(net_forward(x_small, w1, b1, w2, b2))
    assert out_small.shape == (8, 2)
    assert jnp.allclose(out_small, ref(x_small), atol=1e-4, rtol=1e-4)

    # Batch that is not a multiple of 32: exercises the tiny pack-pad and the
    # multi-block grid path.
    x_big = jax.random.normal(jax.random.fold_in(key, 7), (1000, 4), jnp.float32)
    out_big = jax.block_until_ready(net_forward(x_big, w1, b1, w2, b2))
    assert out_big.shape == (1000, 2)
    assert jnp.allclose(out_big, ref(x_big), atol=1e-4, rtol=1e-4)

    print("KERNEL_OK")
</pallas_src>

<mosaic_0001>
module attributes {stable_mosaic.version = 11 : i64} {
  func.func @mlp_kernel(%arg0: i32, %arg1: memref<1x128xf32, #tpu.memory_space<vmem>>, %arg2: memref<128x128xf32, #tpu.memory_space<vmem>>, %arg3: memref<1x128xf32, #tpu.memory_space<vmem>>, %arg4: memref<128x64xf32, #tpu.memory_space<vmem>>, %arg5: memref<1x64xf32, #tpu.memory_space<vmem>>, %arg6: memref<1x64xf32, #tpu.memory_space<vmem>>) attributes {dimension_semantics = [#tpu.dimension_semantics<parallel>], iteration_bounds = array<i64: 1>, scalar_prefetch = 0 : i64, scratch_operands = 0 : i64, tpu.core_type = #tpu.core_type<tc>, window_params = [{transform_indices = @transform_0, window_bounds = array<i64: 1, 128>}, {pipeline_mode = #tpu.pipeline_mode<synchronous>, transform_indices = @transform_1, window_bounds = array<i64: 128, 128>}, {pipeline_mode = #tpu.pipeline_mode<synchronous>, transform_indices = @transform_2, window_bounds = array<i64: 1, 128>}, {pipeline_mode = #tpu.pipeline_mode<synchronous>, transform_indices = @transform_3, window_bounds = array<i64: 128, 64>}, {pipeline_mode = #tpu.pipeline_mode<synchronous>, transform_indices = @transform_4, window_bounds = array<i64: 1, 64>}, {transform_indices = @transform_5, window_bounds = array<i64: 1, 64>}]} {
    %c0 = arith.constant 0 : index
    %c0_0 = arith.constant 0 : index
    %0 = vector.load %arg1[%c0, %c0_0] : memref<1x128xf32, #tpu.memory_space<vmem>>, vector<1x128xf32>
    %c0_1 = arith.constant 0 : index
    %c0_2 = arith.constant 0 : index
    %1 = vector.load %arg2[%c0_1, %c0_2] : memref<128x128xf32, #tpu.memory_space<vmem>>, vector<128x128xf32>
    %cst = arith.constant dense<0.000000e+00> : vector<1x128xf32>
    %2 = tpu.matmul %0, %1, %cst {dimension_numbers = #tpu.dot_dimension_numbers<[1], [0], [0], [1], [0, 0, 1, 1], [], []>} : vector<1x128xf32>, vector<128x128xf32>, vector<1x128xf32> -> vector<1x128xf32>
    %c0_3 = arith.constant 0 : index
    %c0_4 = arith.constant 0 : index
    %3 = vector.load %arg3[%c0_3, %c0_4] : memref<1x128xf32, #tpu.memory_space<vmem>>, vector<1x128xf32>
    %4 = arith.addf %2, %3 : vector<1x128xf32>
    %cst_5 = arith.constant 0.000000e+00 : f32
    %5 = vector.broadcast %cst_5 : f32 to vector<1x128xf32>
    %6 = arith.maximumf %4, %5 : vector<1x128xf32>
    %c0_6 = arith.constant 0 : index
    %c0_7 = arith.constant 0 : index
    %7 = vector.load %arg4[%c0_6, %c0_7] : memref<128x64xf32, #tpu.memory_space<vmem>>, vector<128x64xf32>
    %cst_8 = arith.constant dense<0.000000e+00> : vector<1x64xf32>
    %8 = tpu.matmul %6, %7, %cst_8 {dimension_numbers = #tpu.dot_dimension_numbers<[1], [0], [0], [1], [0, 0, 1, 1], [], []>} : vector<1x128xf32>, vector<128x64xf32>, vector<1x64xf32> -> vector<1x64xf32>
    %c0_9 = arith.constant 0 : index
    %c0_10 = arith.constant 0 : index
    %9 = vector.load %arg5[%c0_9, %c0_10] : memref<1x64xf32, #tpu.memory_space<vmem>>, vector<1x64xf32>
    %10 = arith.addf %8, %9 : vector<1x64xf32>
    %c0_11 = arith.constant 0 : index
    %c0_12 = arith.constant 0 : index
    %11 = vector.load %arg6[%c0_11, %c0_12] : memref<1x64xf32, #tpu.memory_space<vmem>>, vector<1x64xf32>
    tpu.vector_store %arg6[%c0_11, %c0_12], %10 {strides = array<i32>} : memref<1x64xf32, #tpu.memory_space<vmem>>, vector<1x64xf32>,
    return
  }
  func.func @transform_0(%arg0: i32) -> (i32, i32) {
    %c0_i32 = arith.constant 0 : i32
    %c0_i32_0 = arith.constant 0 : i32
    return %arg0, %c0_i32 : i32, i32
  }
  func.func @transform_1(%arg0: i32) -> (i32, i32) {
    %c0_i32 = arith.constant 0 : i32
    %c0_i32_0 = arith.constant 0 : i32
    %c0_i32_1 = arith.constant 0 : i32
    return %c0_i32, %c0_i32_0 : i32, i32
  }
  func.func @transform_2(%arg0: i32) -> (i32, i32) {
    %c0_i32 = arith.constant 0 : i32
    %c0_i32_0 = arith.constant 0 : i32
    %c0_i32_1 = arith.constant 0 : i32
    return %c0_i32, %c0_i32_0 : i32, i32
  }
  func.func @transform_3(%arg0: i32) -> (i32, i32) {
    %c0_i32 = arith.constant 0 : i32
    %c0_i32_0 = arith.constant 0 : i32
    %c0_i32_1 = arith.constant 0 : i32
    return %c0_i32, %c0_i32_0 : i32, i32
  }
  func.func @transform_4(%arg0: i32) -> (i32, i32) {
    %c0_i32 = arith.constant 0 : i32
    %c0_i32_0 = arith.constant 0 : i32
    %c0_i32_1 = arith.constant 0 : i32
    return %c0_i32, %c0_i32_0 : i32, i32
  }
  func.func @transform_5(%arg0: i32) -> (i32, i32) {
    %c0_i32 = arith.constant 0 : i32
    %c0_i32_0 = arith.constant 0 : i32
    return %arg0, %c0_i32 : i32, i32
  }
}

</mosaic_0001>

<llo_original>
// kernel: tpu_custom_call.1
$region0: #{tpu_custom_call.1}
  #allocation0 [shape = 'u32[]', space=smem, size = 0x4, offset = 0x4, fixed_abs, tag = 'smem constant byte address 0x4 - core index']
  #allocation1 [shape = 'u32[144,128]{1,0:T(1,128)}', space=vmem, size = 0x12000, scoped, tag = 'internal scratch']
  %s0 = inlined_call_operand.vmem [shape: f32[1,128], index: 0, kind: input, shape index: {}]
  %s1 = inlined_call_operand.vmem [shape: f32[128,128], index: 1, kind: input, shape index: {}]
  %s2 = inlined_call_operand.vmem [shape: f32[1,128], index: 2, kind: input, shape index: {}]
  %s3 = inlined_call_operand.vmem [shape: f32[128,64], index: 3, kind: input, shape index: {}]
  %s4 = inlined_call_operand.vmem [shape: f32[1,64], index: 4, kind: input, shape index: {}]
  %s5 = inlined_call_operand.hbm [shape: f32[1,64], index: 5, kind: output, shape index: {}]
  %s6 = sld [smem:[#allocation0]]
  $region30: #{tpu_custom_call.1} parent=0
    _
  %s8 = ssub.s32 1, %s6
  %s9 = scalar_select 0, %s8, %s6
  $region1: #{tpu_custom_call.1} parent=0
    #allocation2 [shape = 'u8[512]{0}', space=vmem, size = 0x400, scoped, tag = 'output window, operand 0, single buffered']
    #allocation3 [shape = 's32[1]{0}', space=sflag, size = 0x4, scoped, tag = 'scoped memory for tpu_custom_call.1']
    %10 = vsyncpa [#allocation3], 0
    // Predicated region
    $region2: #{tpu_custom_call.1} parent=1 // pred_check
      _
    $region3: #{tpu_custom_call.1} parent=1 // pred_check_branch
      %12 = sbr.rel (0) target = $region5
    $region4: #{tpu_custom_call.1} parent=1 // pred_region
      _
    $region5: #{tpu_custom_call.1} parent=1 // pred_fallthru
      _
    // Predicated region
    $region6: #{tpu_custom_call.1} parent=1 // pred_check
      _
    $region7: #{tpu_custom_call.1} parent=1 // pred_check_branch
      %14 = sbr.rel (0) target = $region9
    $region8: #{tpu_custom_call.1} parent=1 // pred_region
      _
    $region9: #{tpu_custom_call.1} parent=1 // pred_fallthru
      _
    // Predicated region
    $region10: #{tpu_custom_call.1} parent=1 // pred_check
      _
    $region11: #{tpu_custom_call.1} parent=1 // pred_check_branch
      %16 = sbr.rel (0) target = $region13
    $region12: #{tpu_custom_call.1} parent=1 // pred_region
      _
    $region13: #{tpu_custom_call.1} parent=1 // pred_fallthru
      _
    // Predicated region
    $region14: #{tpu_custom_call.1} parent=1 // pred_check
      _
    $region15: #{tpu_custom_call.1} parent=1 // pred_check_branch
      %18 = sbr.rel (0) target = $region17
    $region16: #{tpu_custom_call.1} parent=1 // pred_region
      _
    $region17: #{tpu_custom_call.1} parent=1 // pred_fallthru
      _
    // Predicated region
    $region18: #{tpu_custom_call.1} parent=1 // pred_check
      _
    $region19: #{tpu_custom_call.1} parent=1 // pred_check_branch
      %20 = sbr.rel (0) target = $region21
    $region20: #{tpu_custom_call.1} parent=1 // pred_region
      _
    $region21: #{tpu_custom_call.1} parent=1 // pred_fallthru
      _
    %v21 = vld [vmem:[%s0] sm:$0x1]
    %v22 = vld [vmem:[%s1] sm:$0xff]
    %v23 = vld [vmem:[%s1 + $0x8] sm:$0xff]
    %v24 = vld [vmem:[%s1 + $0x10] sm:$0xff]
    %v25 = vld [vmem:[%s1 + $0x18] sm:$0xff]
    %v26 = vld [vmem:[%s1 + $0x20] sm:$0xff]
    %v27 = vld [vmem:[%s1 + $0x28] sm:$0xff]
    %v28 = vld [vmem:[%s1 + $0x30] sm:$0xff]
    %v29 = vld [vmem:[%s1 + $0x38] sm:$0xff]
    %v30 = vld [vmem:[%s1 + $0x40] sm:$0xff]
    %v31 = vld [vmem:[%s1 + $0x48] sm:$0xff]
    %v32 = vld [vmem:[%s1 + $0x50] sm:$0xff]
    %v33 = vld [vmem:[%s1 + $0x58] sm:$0xff]
    %v34 = vld [vmem:[%s1 + $0x60] sm:$0xff]
    %v35 = vld [vmem:[%s1 + $0x68] sm:$0xff]
    %v36 = vld [vmem:[%s1 + $0x70] sm:$0xff]
    %v37 = vld [vmem:[%s1 + $0x78] sm:$0xff]
    %v38 = vld [vmem:[%s2] sm:$0x1]
    %39 = vmatprep.subr.mxu0 0.0
    %40 = vmatpush1.msra.mxu0 %v22
    %41 = vmatprep.subr.mxu0 0.0
    %42 = vmatpush1.msra.mxu0 %v23
    %43 = vmatprep.subr.mxu0 0.0
    %44 = vmatpush1.msra.mxu0 %v24
    %45 = vmatprep.subr.mxu0 0.0
    %46 = vmatpush1.msra.mxu0 %v25
    %47 = vmatprep.subr.mxu0 0.0
    %48 = vmatpush1.msra.mxu0 %v26
    %49 = vmatprep.subr.mxu0 0.0
    %50 = vmatpush1.msra.mxu0 %v27
    %51 = vmatprep.subr.mxu0 0.0
    %52 = vmatpush1.msra.mxu0 %v28
    %53 = vmatprep.subr.mxu0 0.0
    %54 = vmatpush1.msra.mxu0 %v29
    %55 = vmatprep.subr.mxu0 0.0
    %56 = vmatpush1.msra.mxu0 %v30
    %57 = vmatprep.subr.mxu0 0.0
    %58 = vmatpush1.msra.mxu0 %v31
    %59 = vmatprep.subr.mxu0 0.0
    %60 = vmatpush1.msra.mxu0 %v32
    %61 = vmatprep.subr.mxu0 0.0
    %62 = vmatpush1.msra.mxu0 %v33
    %63 = vmatprep.subr.mxu0 0.0
    %64 = vmatpush1.msra.mxu0 %v34
    %65 = vmatprep.subr.mxu0 0.0
    %66 = vmatpush1.msra.mxu0 %v35
    %67 = vmatprep.subr.mxu0 0.0
    %68 = vmatpush1.msra.mxu0 %v36
    %69 = vmatprep.subr.mxu0 0.0
    %70 = vmatpush1.msra.mxu0 %v37
    %71 = vmatprep.subr.mxu0 0.0
    %72 = vmatpush1.msra.mxu0 0.0
    %73 = vmatprep.subr.mxu0 0.0
    %74 = vmatpush1.msra.mxu0 0.0
    %75 = vmatprep.subr.mxu0 0.0
    %76 = vmatpush1.msra.mxu0 0.0
    %77 = vmatprep.subr.mxu0 0.0
    %78 = vmatpush1.msra.mxu0 0.0
    %79 = vmatprep.subr.mxu0 0.0
    %80 = vmatpush1.msra.mxu0 0.0
    %81 = vmatprep.subr.mxu0 0.0
    %82 = vmatpush1.msra.mxu0 0.0
    %83 = vmatprep.subr.mxu0 0.0
    %84 = vmatpush1.msra.mxu0 0.0
    %85 = vmatprep.subr.mxu0 0.0
    %86 = vmatpush1.msra.mxu0 0.0
    %87 = vmatprep.subr.mxu0 0.0
    %88 = vmatpush1.msra.mxu0 0.0
    %89 = vmatprep.subr.mxu0 0.0
    %90 = vmatpush1.msra.mxu0 0.0
    %91 = vmatprep.subr.mxu0 0.0
    %92 = vmatpush1.msra.mxu0 0.0
    %93 = vmatprep.subr.mxu0 0.0
    %94 = vmatpush1.msra.mxu0 0.0
    %95 = vmatprep.subr.mxu0 0.0
    %96 = vmatpush1.msra.mxu0 0.0
    %97 = vmatprep.subr.mxu0 0.0
    %98 = vmatpush1.msra.mxu0 0.0
    %99 = vmatprep.subr.mxu0 0.0
    %100 = vmatpush1.msra.mxu0 0.0
    %101 = vmatprep.subr.mxu0 0.0
    %102 = vmatpush1.msra.mxu0 0.0
    %103 = vmatprep.mubr.f32.mxu0 0.0
    %104 = vmatmul.mubr.f32.gmra.mrb[0].mxu0 %v21
    %v105 = vpop.f32.mrb[0].mxu0
    %v106 = vadd.f32 %v38, %v105
    %v107 = vpop.f32.mrb[0].mxu0
    %108 = vdwg.mxu0
    %v109 = vmax.f32 %v106, 0.0
    %v110 = vld [vmem:[%s3] sm:$0xff]
    %v111 = vld [vmem:[%s3 + $0x8] sm:$0xff]
    %v112 = vld [vmem:[%s3 + $0x10] sm:$0xff]
    %v113 = vld [vmem:[%s3 + $0x18] sm:$0xff]
    %v114 = vld [vmem:[%s3 + $0x20] sm:$0xff]
    %v115 = vld [vmem:[%s3 + $0x28] sm:$0xff]
    %v116 = vld [vmem:[%s3 + $0x30] sm:$0xff]
    %v117 = vld [vmem:[%s3 + $0x38] sm:$0xff]
    %v118 = vld [vmem:[%s3 + $0x40] sm:$0xff]
    %v119 = vld [vmem:[%s3 + $0x48] sm:$0xff]
    %v120 = vld [vmem:[%s3 + $0x50] sm:$0xff]
    %v121 = vld [vmem:[%s3 + $0x58] sm:$0xff]
    %v122 = vld [vmem:[%s3 + $0x60] sm:$0xff]
    %v123 = vld [vmem:[%s3 + $0x68] sm:$0xff]
    %v124 = vld [vmem:[%s3 + $0x70] sm:$0xff]
    %v125 = vld [vmem:[%s3 + $0x78] sm:$0xff]
    %v126 = vld [vmem:[%s4] sm:$0x1]
    %127 = vmatprep.subr.mxu0 0.0
    %128 = vmatpush1.msra.mxu0 %v110
    %129 = vmatprep.subr.mxu0 0.0
    %130 = vmatpush1.msra.mxu0 %v111
    %131 = vmatprep.subr.mxu0 0.0
    %132 = vmatpush1.msra.mxu0 %v112
    %133 = vmatprep.subr.mxu0 0.0
    %134 = vmatpush1.msra.mxu0 %v113
    %135 = vmatprep.subr.mxu0 0.0
    %136 = vmatpush1.msra.mxu0 %v114
    %137 = vmatprep.subr.mxu0 0.0
    %138 = vmatpush1.msra.mxu0 %v115
    %139 = vmatprep.subr.mxu0 0.0
    %140 = vmatpush1.msra.mxu0 %v116
    %141 = vmatprep.subr.mxu0 0.0
    %142 = vmatpush1.msra.mxu0 %v117
    %143 = vmatprep.subr.mxu0 0.0
    %144 = vmatpush1.msra.mxu0 %v118
    %145 = vmatprep.subr.mxu0 0.0
    %146 = vmatpush1.msra.mxu0 %v119
    %147 = vmatprep.subr.mxu0 0.0
    %148 = vmatpush1.msra.mxu0 %v120
    %149 = vmatprep.subr.mxu0 0.0
    %150 = vmatpush1.msra.mxu0 %v121
    %151 = vmatprep.subr.mxu0 0.0
    %152 = vmatpush1.msra.mxu0 %v122
    %153 = vmatprep.subr.mxu0 0.0
    %154 = vmatpush1.msra.mxu0 %v123
    %155 = vmatprep.subr.mxu0 0.0
    %156 = vmatpush1.msra.mxu0 %v124
    %157 = vmatprep.subr.mxu0 0.0
    %158 = vmatpush1.msra.mxu0 %v125
    %159 = vmatprep.subr.mxu0 0.0
    %160 = vmatpush1.msra.mxu0 0.0
    %161 = vmatprep.subr.mxu0 0.0
    %162 = vmatpush1.msra.mxu0 0.0
    %163 = vmatprep.subr.mxu0 0.0
    %164 = vmatpush1.msra.mxu0 0.0
    %165 = vmatprep.subr.mxu0 0.0
    %166 = vmatpush1.msra.mxu0 0.0
    %167 = vmatprep.subr.mxu0 0.0
    %168 = vmatpush1.msra.mxu0 0.0
    %169 = vmatprep.subr.mxu0 0.0
    %170 = vmatpush1.msra.mxu0 0.0
    %171 = vmatprep.subr.mxu0 0.0
    %172 = vmatpush1.msra.mxu0 0.0
    %173 = vmatprep.subr.mxu0 0.0
    %174 = vmatpush1.msra.mxu0 0.0
    %175 = vmatprep.subr.mxu0 0.0
    %176 = vmatpush1.msra.mxu0 0.0
    %177 = vmatprep.subr.mxu0 0.0
    %178 = vmatpush1.msra.mxu0 0.0
    %179 = vmatprep.subr.mxu0 0.0
    %180 = vmatpush1.msra.mxu0 0.0
    %181 = vmatprep.subr.mxu0 0.0
    %182 = vmatpush1.msra.mxu0 0.0
    %183 = vmatprep.subr.mxu0 0.0
    %184 = vmatpush1.msra.mxu0 0.0
    %185 = vmatprep.subr.mxu0 0.0
    %186 = vmatpush1.msra.mxu0 0.0
    %187 = vmatprep.subr.mxu0 0.0
    %188 = vmatpush1.msra.mxu0 0.0
    %189 = vmatprep.subr.mxu0 0.0
    %190 = vmatpush1.msra.mxu0 0.0
    %191 = vmatprep.mubr.f32.mxu0 0.0
    %192 = vmatmul.mubr.f32.gmra.mrb[0].mxu0 %v109
    %v193 = vpop.f32.mrb[0].mxu0
    %v194 = vadd.f32 %v126, %v193
    %v195 = vpop.f32.mrb[0].mxu0
    %196 = vdwg.mxu0
    %vm197 = vcmask 516096
    %198 = vst.msk [vmem:[#allocation2] sm:$0x1] %vm197, %v194
    // Predicated region
    $region22: #{tpu_custom_call.1} parent=1 // pred_check
      _
    $region23: #{tpu_custom_call.1} parent=1 // pred_check_branch
      %200 = sbr.rel (0) target = $region25
    $region24: #{tpu_custom_call.1} parent=1 // pred_region
      %s202 = ssub.s32 16, 16
      %203 = vsyncadd [#allocation3], %s202
      %s205 = sshll.u32 [#allocation2], 4
      %s206 = int_to_ptr.vmem [resolvable:$true] %s205
      %208 = dma.vmem_to_hbm [thread:$0]  %s206, 16, %s5, [#allocation3]
    $region25: #{tpu_custom_call.1} parent=1 // pred_fallthru
      _
    // Predicated region
    $region26: #{tpu_custom_call.1} parent=1 // pred_check
      _
    $region27: #{tpu_custom_call.1} parent=1 // pred_check_branch
      %210 = sbr.rel (0) target = $region29
    $region28: #{tpu_custom_call.1} parent=1 // pred_region
      %211 = dma.done [#allocation3], 16
    $region29: #{tpu_custom_call.1} parent=1 // pred_fallthru
      _
    %212 = vsyncpa [#allocation3], 1

</llo_original>
